<compile_context>
chip_gen: v7x
topology: tpu7x:2x2x1
jax: 0.10.0
libtpu: 0.0.40
codegen_flags: <defaults>
</compile_context>

<pallas_src>
import functools

import jax
import jax.numpy as jnp
from jax.experimental import pallas as pl
from jax.experimental.pallas import tpu as pltpu

LANE = 128


def _mlp_kernel(x_ref, w_in_ref, b_in_ref, w_h_ref, b_h_ref, w_out_ref,
                b_out_ref, o_ref, *, n_hidden_layers, matmul_dtype):
    # x_ref:     (TM, C_in)
    # w_in_ref:  (C_in, H),   b_in_ref:  (1, H)
    # w_h_ref:   (L, H, H),   b_h_ref:   (L, 1, H)
    # w_out_ref: (H, C_out_pad), b_out_ref: (1, C_out_pad)   (lane-dense)
    # o_ref:     (TM, C_out_pad)
    x = x_ref[...].astype(matmul_dtype)
    h = jnp.dot(x, w_in_ref[...].astype(matmul_dtype),
                preferred_element_type=jnp.float32) + b_in_ref[...]
    h = jnp.maximum(h, 0.0)  # bias/ReLU kept in f32 (v5e VPU has no bf16)

    # hidden layers: layer count is known at trace time; small L so a static
    # unroll is fine (switch to lax.fori_loop(unroll=True) if L grows > ~4).
    for l in range(n_hidden_layers):
        h = jnp.dot(h.astype(matmul_dtype), w_h_ref[l].astype(matmul_dtype),
                    preferred_element_type=jnp.float32) + b_h_ref[l]
        h = jnp.maximum(h, 0.0)

    out = jnp.dot(h.astype(matmul_dtype), w_out_ref[...].astype(matmul_dtype),
                  preferred_element_type=jnp.float32) + b_out_ref[...]
    o_ref[...] = out.astype(o_ref.dtype)


def mlp_pallas(x, params, *, row_tile=512, matmul_dtype=jnp.float32):
    """x: (..., in_channels) float32.  Returns (..., out_channels)."""
    w_in, b_in, w_h, b_h, w_out, b_out = params
    c_in = w_in.shape[0]
    c_out = w_out.shape[1]
    n_hidden_layers = w_h.shape[0]

    lead_shape = x.shape[:-1]
    x2 = x.reshape(-1, c_in)
    n_rows = x2.shape[0]

    # Clamp the row tile to the (sublane-rounded) row count so tiny inputs use
    # a single exact block; large inputs get the full MXU-friendly 512 rows.
    rows_rounded = ((n_rows + 7) // 8) * 8
    row_tile = max(8, min(row_tile, rows_rounded))

    # Lane-dense output: pad the last-layer weight/bias columns to a multiple
    # of 128 lanes.  Padded columns compute exact zeros; sliced off below.
    c_out_pad = max(LANE, ((c_out + LANE - 1) // LANE) * LANE)
    if c_out_pad != c_out:
        w_out_p = jnp.pad(w_out, ((0, 0), (0, c_out_pad - c_out)))
        b_out_p = jnp.pad(b_out, ((0, 0), (0, c_out_pad - c_out)))
    else:
        w_out_p, b_out_p = w_out, b_out

    # No wrapper-side row padding: ceil-div grid; Pallas masks the ragged last
    # tile on load/store (rows are independent, nothing reduces across rows).
    grid = (pl.cdiv(n_rows, row_tile),)

    kernel = functools.partial(_mlp_kernel,
                               n_hidden_layers=n_hidden_layers,
                               matmul_dtype=matmul_dtype)

    out = pl.pallas_call(
        kernel,
        out_shape=jax.ShapeDtypeStruct((n_rows, c_out_pad), x.dtype),
        grid_spec=pltpu.PrefetchScalarGridSpec(
            num_scalar_prefetch=0,
            grid=grid,
            in_specs=[
                pl.BlockSpec((row_tile, c_in), lambda i: (i, 0)),    # x rows
                pl.BlockSpec(w_in.shape, lambda i: (0, 0)),          # w_in
                pl.BlockSpec(b_in.shape, lambda i: (0, 0)),          # b_in
                pl.BlockSpec(w_h.shape, lambda i: (0, 0, 0)),        # w_h
                pl.BlockSpec(b_h.shape, lambda i: (0, 0, 0)),        # b_h
                pl.BlockSpec(w_out_p.shape, lambda i: (0, 0)),       # w_out
                pl.BlockSpec(b_out_p.shape, lambda i: (0, 0)),       # b_out
            ],
            out_specs=pl.BlockSpec((row_tile, c_out_pad), lambda i: (i, 0)),
        ),
        # Weights/activations are tiny here; default VMEM limit is plenty.
        # Re-derive row_tile against 64 MiB if hidden_channels is scaled up
        # on v7x (set vmem_limit_bytes then).
        compiler_params=pltpu.CompilerParams(
            dimension_semantics=("parallel",)),
    )(x2, w_in, b_in, w_h, b_h, w_out_p, b_out_p)

    return out[:, :c_out].reshape(*lead_shape, c_out)


def init_mlp_params(key, in_channels, out_channels, hidden_channels,
                    hidden_layers):
    """Deterministic init mimicking nn.Linear's U(-1/sqrt(fan_in), +...)."""
    def linear(k, fan_in, fan_out):
        kw, kb = jax.random.split(k)
        bound = 1.0 / jnp.sqrt(fan_in)
        w = jax.random.uniform(kw, (fan_in, fan_out), jnp.float32,
                               -bound, bound)
        b = jax.random.uniform(kb, (1, fan_out), jnp.float32, -bound, bound)
        return w, b

    keys = jax.random.split(key, hidden_layers + 2)
    w_in, b_in = linear(keys[0], in_channels, hidden_channels)

    w_hs, b_hs = [], []
    for l in range(hidden_layers):
        w, b = linear(keys[1 + l], hidden_channels, hidden_channels)
        w_hs.append(w)
        b_hs.append(b[None])  # (1, 1, H)
    w_h = jnp.stack(w_hs, axis=0)          # (L, H, H)
    b_h = jnp.concatenate(b_hs, axis=0)    # (L, 1, H)

    w_out, b_out = linear(keys[-1], hidden_channels, out_channels)
    return (w_in, b_in, w_h, b_h, w_out, b_out)


def mlp_reference(x, params):
    w_in, b_in, w_h, b_h, w_out, b_out = params
    h = jax.nn.relu(x @ w_in + b_in[0])
    for l in range(w_h.shape[0]):
        h = jax.nn.relu(h @ w_h[l] + b_h[l, 0])
    return h @ w_out + b_out[0]


if __name__ == "__main__":
    in_channels, out_channels = 4, 2
    hidden_channels, hidden_layers = 32, 2
    batch, seq = 2, 8   # input h: (batch, seq, in_channels), channels-last

    key = jax.random.PRNGKey(0)
    k_param, k_x = jax.random.split(key)
    params = init_mlp_params(k_param, in_channels, out_channels,
                             hidden_channels, hidden_layers)
    x = jax.random.normal(k_x, (batch, seq, in_channels), jnp.float32)

    # f32 matmul path for the exactness check; pass matmul_dtype=jnp.bfloat16
    # on v6e/v7x for higher MXU throughput (f32 accumulation kept).
    out = mlp_pallas(x, params)
    out = jax.block_until_ready(out)

    ref = mlp_reference(x.reshape(-1, in_channels), params).reshape(
        batch, seq, out_channels)
    assert out.shape == (batch, seq, out_channels)
    assert jnp.allclose(out, ref, atol=1e-5, rtol=1e-5)

    print("KERNEL_OK")
</pallas_src>

<mosaic_0001>
module attributes {stable_mosaic.version = 11 : i64} {
  func.func @_mlp_kernel(%arg0: i32, %arg1: memref<16x4xf32, #tpu.memory_space<vmem>>, %arg2: memref<4x32xf32, #tpu.memory_space<vmem>>, %arg3: memref<1x32xf32, #tpu.memory_space<vmem>>, %arg4: memref<2x32x32xf32, #tpu.memory_space<vmem>>, %arg5: memref<2x1x32xf32, #tpu.memory_space<vmem>>, %arg6: memref<32x128xf32, #tpu.memory_space<vmem>>, %arg7: memref<1x128xf32, #tpu.memory_space<vmem>>, %arg8: memref<16x128xf32, #tpu.memory_space<vmem>>) attributes {dimension_semantics = [#tpu.dimension_semantics<parallel>], iteration_bounds = array<i64: 1>, scalar_prefetch = 0 : i64, scratch_operands = 0 : i64, tpu.core_type = #tpu.core_type<tc>, window_params = [{transform_indices = @transform_0, window_bounds = array<i64: 16, 4>}, {pipeline_mode = #tpu.pipeline_mode<synchronous>, transform_indices = @transform_1, window_bounds = array<i64: 4, 32>}, {pipeline_mode = #tpu.pipeline_mode<synchronous>, transform_indices = @transform_2, window_bounds = array<i64: 1, 32>}, {pipeline_mode = #tpu.pipeline_mode<synchronous>, transform_indices = @transform_3, window_bounds = array<i64: 2, 32, 32>}, {pipeline_mode = #tpu.pipeline_mode<synchronous>, transform_indices = @transform_4, window_bounds = array<i64: 2, 1, 32>}, {pipeline_mode = #tpu.pipeline_mode<synchronous>, transform_indices = @transform_5, window_bounds = array<i64: 32, 128>}, {pipeline_mode = #tpu.pipeline_mode<synchronous>, transform_indices = @transform_6, window_bounds = array<i64: 1, 128>}, {transform_indices = @transform_7, window_bounds = array<i64: 16, 128>}]} {
    %c0 = arith.constant 0 : index
    %c0_0 = arith.constant 0 : index
    %0 = vector.load %arg1[%c0, %c0_0] : memref<16x4xf32, #tpu.memory_space<vmem>>, vector<16x4xf32>
    %c0_1 = arith.constant 0 : index
    %c0_2 = arith.constant 0 : index
    %1 = vector.load %arg2[%c0_1, %c0_2] : memref<4x32xf32, #tpu.memory_space<vmem>>, vector<4x32xf32>
    %cst = arith.constant dense<0.000000e+00> : vector<16x32xf32>
    %2 = tpu.matmul %0, %1, %cst {dimension_numbers = #tpu.dot_dimension_numbers<[1], [0], [0], [1], [0, 0, 1, 1], [], []>} : vector<16x4xf32>, vector<4x32xf32>, vector<16x32xf32> -> vector<16x32xf32>
    %c0_3 = arith.constant 0 : index
    %c0_4 = arith.constant 0 : index
    %3 = vector.load %arg3[%c0_3, %c0_4] : memref<1x32xf32, #tpu.memory_space<vmem>>, vector<1x32xf32>
    %4 = vector.broadcast %3 : vector<1x32xf32> to vector<16x32xf32>
    %5 = arith.addf %2, %4 : vector<16x32xf32>
    %cst_5 = arith.constant 0.000000e+00 : f32
    %6 = vector.broadcast %cst_5 : f32 to vector<16x32xf32>
    %7 = arith.maximumf %5, %6 : vector<16x32xf32>
    %c0_6 = arith.constant 0 : index
    %c0_7 = arith.constant 0 : index
    %c0_8 = arith.constant 0 : index
    %8 = vector.load %arg4[%c0_6, %c0_7, %c0_8] : memref<2x32x32xf32, #tpu.memory_space<vmem>>, vector<1x32x32xf32>
    %9 = vector.shape_cast %8 : vector<1x32x32xf32> to vector<32x32xf32>
    %cst_9 = arith.constant dense<0.000000e+00> : vector<16x32xf32>
    %10 = tpu.matmul %7, %9, %cst_9 {dimension_numbers = #tpu.dot_dimension_numbers<[1], [0], [0], [1], [0, 0, 1, 1], [], []>} : vector<16x32xf32>, vector<32x32xf32>, vector<16x32xf32> -> vector<16x32xf32>
    %c0_10 = arith.constant 0 : index
    %c0_11 = arith.constant 0 : index
    %c0_12 = arith.constant 0 : index
    %11 = vector.load %arg5[%c0_10, %c0_11, %c0_12] : memref<2x1x32xf32, #tpu.memory_space<vmem>>, vector<1x1x32xf32>
    %12 = vector.shape_cast %11 : vector<1x1x32xf32> to vector<1x32xf32>
    %13 = vector.broadcast %12 : vector<1x32xf32> to vector<16x32xf32>
    %14 = arith.addf %10, %13 : vector<16x32xf32>
    %cst_13 = arith.constant 0.000000e+00 : f32
    %15 = vector.broadcast %cst_13 : f32 to vector<16x32xf32>
    %16 = arith.maximumf %14, %15 : vector<16x32xf32>
    %c1 = arith.constant 1 : index
    %c0_14 = arith.constant 0 : index
    %c0_15 = arith.constant 0 : index
    %17 = vector.load %arg4[%c1, %c0_14, %c0_15] : memref<2x32x32xf32, #tpu.memory_space<vmem>>, vector<1x32x32xf32>
    %18 = vector.shape_cast %17 : vector<1x32x32xf32> to vector<32x32xf32>
    %cst_16 = arith.constant dense<0.000000e+00> : vector<16x32xf32>
    %19 = tpu.matmul %16, %18, %cst_16 {dimension_numbers = #tpu.dot_dimension_numbers<[1], [0], [0], [1], [0, 0, 1, 1], [], []>} : vector<16x32xf32>, vector<32x32xf32>, vector<16x32xf32> -> vector<16x32xf32>
    %c1_17 = arith.constant 1 : index
    %c0_18 = arith.constant 0 : index
    %c0_19 = arith.constant 0 : index
    %20 = vector.load %arg5[%c1_17, %c0_18, %c0_19] : memref<2x1x32xf32, #tpu.memory_space<vmem>>, vector<1x1x32xf32>
    %21 = vector.shape_cast %20 : vector<1x1x32xf32> to vector<1x32xf32>
    %22 = vector.broadcast %21 : vector<1x32xf32> to vector<16x32xf32>
    %23 = arith.addf %19, %22 : vector<16x32xf32>
    %cst_20 = arith.constant 0.000000e+00 : f32
    %24 = vector.broadcast %cst_20 : f32 to vector<16x32xf32>
    %25 = arith.maximumf %23, %24 : vector<16x32xf32>
    %c0_21 = arith.constant 0 : index
    %c0_22 = arith.constant 0 : index
    %26 = vector.load %arg6[%c0_21, %c0_22] : memref<32x128xf32, #tpu.memory_space<vmem>>, vector<32x128xf32>
    %cst_23 = arith.constant dense<0.000000e+00> : vector<16x128xf32>
    %27 = tpu.matmul %25, %26, %cst_23 {dimension_numbers = #tpu.dot_dimension_numbers<[1], [0], [0], [1], [0, 0, 1, 1], [], []>} : vector<16x32xf32>, vector<32x128xf32>, vector<16x128xf32> -> vector<16x128xf32>
    %c0_24 = arith.constant 0 : index
    %c0_25 = arith.constant 0 : index
    %28 = vector.load %arg7[%c0_24, %c0_25] : memref<1x128xf32, #tpu.memory_space<vmem>>, vector<1x128xf32>
    %29 = vector.broadcast %28 : vector<1x128xf32> to vector<16x128xf32>
    %30 = arith.addf %27, %29 : vector<16x128xf32>
    %c0_26 = arith.constant 0 : index
    %c0_27 = arith.constant 0 : index
    %31 = vector.load %arg8[%c0_26, %c0_27] : memref<16x128xf32, #tpu.memory_space<vmem>>, vector<16x128xf32>
    tpu.vector_store %arg8[%c0_26, %c0_27], %30 {strides = array<i32>} : memref<16x128xf32, #tpu.memory_space<vmem>>, vector<16x128xf32>,
    return
  }
  func.func @transform_0(%arg0: i32) -> (i32, i32) {
    %c0_i32 = arith.constant 0 : i32
    %c0_i32_0 = arith.constant 0 : i32
    return %arg0, %c0_i32 : i32, i32
  }
  func.func @transform_1(%arg0: i32) -> (i32, i32) {
    %c0_i32 = arith.constant 0 : i32
    %c0_i32_0 = arith.constant 0 : i32
    %c0_i32_1 = arith.constant 0 : i32
    return %c0_i32, %c0_i32_0 : i32, i32
  }
  func.func @transform_2(%arg0: i32) -> (i32, i32) {
    %c0_i32 = arith.constant 0 : i32
    %c0_i32_0 = arith.constant 0 : i32
    %c0_i32_1 = arith.constant 0 : i32
    return %c0_i32, %c0_i32_0 : i32, i32
  }
  func.func @transform_3(%arg0: i32) -> (i32, i32, i32) {
    %c0_i32 = arith.constant 0 : i32
    %c0_i32_0 = arith.constant 0 : i32
    %c0_i32_1 = arith.constant 0 : i32
    %c0_i32_2 = arith.constant 0 : i32
    return %c0_i32, %c0_i32_0, %c0_i32_1 : i32, i32, i32
  }
  func.func @transform_4(%arg0: i32) -> (i32, i32, i32) {
    %c0_i32 = arith.constant 0 : i32
    %c0_i32_0 = arith.constant 0 : i32
    %c0_i32_1 = arith.constant 0 : i32
    %c0_i32_2 = arith.constant 0 : i32
    return %c0_i32, %c0_i32_0, %c0_i32_1 : i32, i32, i32
  }
  func.func @transform_5(%arg0: i32) -> (i32, i32) {
    %c0_i32 = arith.constant 0 : i32
    %c0_i32_0 = arith.constant 0 : i32
    %c0_i32_1 = arith.constant 0 : i32
    return %c0_i32, %c0_i32_0 : i32, i32
  }
  func.func @transform_6(%arg0: i32) -> (i32, i32) {
    %c0_i32 = arith.constant 0 : i32
    %c0_i32_0 = arith.constant 0 : i32
    %c0_i32_1 = arith.constant 0 : i32
    return %c0_i32, %c0_i32_0 : i32, i32
  }
  func.func @transform_7(%arg0: i32) -> (i32, i32) {
    %c0_i32 = arith.constant 0 : i32
    %c0_i32_0 = arith.constant 0 : i32
    return %arg0, %c0_i32 : i32, i32
  }
}

</mosaic_0001>

<llo_original>
// kernel: tpu_custom_call.1
$region0: #{tpu_custom_call.1}
  #allocation0 [shape = 'u32[]', space=smem, size = 0x4, offset = 0x4, fixed_abs, tag = 'smem constant byte address 0x4 - core index']
  #allocation1 [shape = 'u32[144,128]{1,0:T(1,128)}', space=vmem, size = 0x12000, scoped, tag = 'internal scratch']
  %s0 = inlined_call_operand.vmem [shape: f32[16,4], index: 0, kind: input, shape index: {}]
  %s1 = inlined_call_operand.vmem [shape: f32[4,32], index: 1, kind: input, shape index: {}]
  %s2 = inlined_call_operand.hbm [shape: f32[1,32], index: 2, kind: input, shape index: {}]
  %s3 = inlined_call_operand.hbm [shape: f32[2,32,32], index: 3, kind: input, shape index: {}]
  %s4 = inlined_call_operand.vmem [shape: f32[2,1,32], index: 4, kind: input, shape index: {}]
  %s5 = inlined_call_operand.vmem [shape: f32[32,128], index: 5, kind: input, shape index: {}]
  %s6 = inlined_call_operand.vmem [shape: f32[1,128], index: 6, kind: input, shape index: {}]
  %s7 = inlined_call_operand.hbm [shape: f32[16,128], index: 7, kind: output, shape index: {}]
  %s8 = sld [smem:[#allocation0]]
  $region46: #{tpu_custom_call.1} parent=0
    _
  %s10 = ssub.s32 1, %s8
  %s11 = scalar_select 0, %s10, %s8
  $region1: #{tpu_custom_call.1} parent=0
    #allocation2 [shape = 'u8[512]{0}', space=vmem, size = 0x400, scoped, tag = 'input window, operand 2, single buffered']
    #allocation3 [shape = 's32[1]{0}', space=sflag, size = 0x4, scoped, tag = 'scoped memory for tpu_custom_call.1']
    #allocation4 [shape = 's32[1]{0}', space=sflag, size = 0x4, scoped, tag = 'scoped memory for tpu_custom_call.1']
    #allocation5 [shape = 'u8[32768]{0}', space=vmem, size = 0x8000, scoped, tag = 'input window, operand 3, single buffered']
    #allocation6 [shape = 's32[1]{0}', space=sflag, size = 0x4, scoped, tag = 'scoped memory for tpu_custom_call.1']
    #allocation7 [shape = 'u8[8192]{0}', space=vmem, size = 0x2000, scoped, tag = 'output window, operand 0, single buffered']
    %12 = vsyncpa [#allocation3], 0
    %13 = vsyncpa [#allocation6], 0
    %14 = vsyncpa [#allocation4], 0
    // Predicated region
    $region2: #{tpu_custom_call.1} parent=1 // pred_check
      _
    $region3: #{tpu_custom_call.1} parent=1 // pred_check_branch
      %16 = sbr.rel (0) target = $region5
    $region4: #{tpu_custom_call.1} parent=1 // pred_region
      _
    $region5: #{tpu_custom_call.1} parent=1 // pred_fallthru
      _
    // Predicated region
    $region6: #{tpu_custom_call.1} parent=1 // pred_check
      _
    $region7: #{tpu_custom_call.1} parent=1 // pred_check_branch
      %18 = sbr.rel (0) target = $region9
    $region8: #{tpu_custom_call.1} parent=1 // pred_region
      _
    $region9: #{tpu_custom_call.1} parent=1 // pred_fallthru
      _
    // Predicated region
    $region10: #{tpu_custom_call.1} parent=1 // pred_check
      _
    $region11: #{tpu_custom_call.1} parent=1 // pred_check_branch
      %20 = sbr.rel (0) target = $region13
    $region12: #{tpu_custom_call.1} parent=1 // pred_region
      %s22 = ssub.s32 16, 16
      %23 = vsyncadd [#allocation3], %s22
      %s25 = sshll.u32 [#allocation2], 4
      %s26 = int_to_ptr.vmem [resolvable:$true] %s25
      %28 = dma.hbm_to_vmem [thread:$0]  %s2, 16, %s26, [#allocation3]
    $region13: #{tpu_custom_call.1} parent=1 // pred_fallthru
      _
    // Predicated region
    $region14: #{tpu_custom_call.1} parent=1 // pred_check
      _
    $region15: #{tpu_custom_call.1} parent=1 // pred_check_branch
      %30 = sbr.rel (0) target = $region17
    $region16: #{tpu_custom_call.1} parent=1 // pred_region
      %s32 = ssub.s32 1024, 1024
      %33 = vsyncadd [#allocation6], %s32
      %s34 = sshll.u32 [#allocation5], 4
      %s35 = int_to_ptr.vmem [resolvable:$true] %s34
      %40 = dma.hbm_to_vmem [thread:$0]  %s3, 1024, %s35, [#allocation6], 128, 128, 8
    $region17: #{tpu_custom_call.1} parent=1 // pred_fallthru
      _
    // Predicated region
    $region18: #{tpu_custom_call.1} parent=1 // pred_check
      _
    $region19: #{tpu_custom_call.1} parent=1 // pred_check_branch
      %42 = sbr.rel (0) target = $region21
    $region20: #{tpu_custom_call.1} parent=1 // pred_region
      _
    $region21: #{tpu_custom_call.1} parent=1 // pred_fallthru
      _
    // Predicated region
    $region22: #{tpu_custom_call.1} parent=1 // pred_check
      _
    $region23: #{tpu_custom_call.1} parent=1 // pred_check_branch
      %44 = sbr.rel (0) target = $region25
    $region24: #{tpu_custom_call.1} parent=1 // pred_region
      _
    $region25: #{tpu_custom_call.1} parent=1 // pred_fallthru
      _
    // Predicated region
    $region26: #{tpu_custom_call.1} parent=1 // pred_check
      _
    $region27: #{tpu_custom_call.1} parent=1 // pred_check_branch
      %46 = sbr.rel (0) target = $region29
    $region28: #{tpu_custom_call.1} parent=1 // pred_region
      _
    $region29: #{tpu_custom_call.1} parent=1 // pred_fallthru
      _
    // Predicated region
    $region30: #{tpu_custom_call.1} parent=1 // pred_check
      _
    $region31: #{tpu_custom_call.1} parent=1 // pred_check_branch
      %48 = sbr.rel (0) target = $region33
    $region32: #{tpu_custom_call.1} parent=1 // pred_region
      %49 = dma.done [#allocation3], 16
    $region33: #{tpu_custom_call.1} parent=1 // pred_fallthru
      _
    // Predicated region
    $region34: #{tpu_custom_call.1} parent=1 // pred_check
      _
    $region35: #{tpu_custom_call.1} parent=1 // pred_check_branch
      %51 = sbr.rel (0) target = $region37
    $region36: #{tpu_custom_call.1} parent=1 // pred_region
      %52 = dma.done [#allocation6], 1024
    $region37: #{tpu_custom_call.1} parent=1 // pred_fallthru
      _
    %v53 = vld [vmem:[%s0] sm:$0xff]
    %v54 = vld [vmem:[%s0 + $0x8] sm:$0xff]
    %v55 = vld [vmem:[%s1] sm:$0xf]
    %v56 = vld [vmem:[#allocation2] sm:$0x1]
    %v58 = vlaneseq
    %v59 = vshrl.u32 %v58, 7
    %v60 = vsub.s32 0, %v59
    %v61 = vrot.slane %v56, %v60
    %vm63 = vcmask 31744
    %v65 = vsel %vm63, %v53, 0
    %v68 = vsel %vm63, %v54, 0
    %vm70 = vcmask 1043456
    %v72 = vsel %vm70, %v55, 0
    %74 = vmatprep.subr.mxu0 0.0
    %75 = vmatpush1.msra.mxu0 %v72
    %76 = vmatprep.subr.mxu0 0.0
    %77 = vmatpush1.msra.mxu0 0.0
    %78 = vmatprep.subr.mxu0 0.0
    %79 = vmatpush1.msra.mxu0 0.0
    %80 = vmatprep.subr.mxu0 0.0
    %81 = vmatpush1.msra.mxu0 0.0
    %82 = vmatprep.subr.mxu0 0.0
    %83 = vmatpush1.msra.mxu0 0.0
    %84 = vmatprep.subr.mxu0 0.0
    %85 = vmatpush1.msra.mxu0 0.0
    %86 = vmatprep.subr.mxu0 0.0
    %87 = vmatpush1.msra.mxu0 0.0
    %88 = vmatprep.subr.mxu0 0.0
    %89 = vmatpush1.msra.mxu0 0.0
    %90 = vmatprep.subr.mxu0 0.0
    %91 = vmatpush1.msra.mxu0 0.0
    %92 = vmatprep.subr.mxu0 0.0
    %93 = vmatpush1.msra.mxu0 0.0
    %94 = vmatprep.subr.mxu0 0.0
    %95 = vmatpush1.msra.mxu0 0.0
    %96 = vmatprep.subr.mxu0 0.0
    %97 = vmatpush1.msra.mxu0 0.0
    %98 = vmatprep.subr.mxu0 0.0
    %99 = vmatpush1.msra.mxu0 0.0
    %100 = vmatprep.subr.mxu0 0.0
    %101 = vmatpush1.msra.mxu0 0.0
    %102 = vmatprep.subr.mxu0 0.0
    %103 = vmatpush1.msra.mxu0 0.0
    %104 = vmatprep.subr.mxu0 0.0
    %105 = vmatpush1.msra.mxu0 0.0
    %106 = vmatprep.subr.mxu0 0.0
    %107 = vmatpush1.msra.mxu0 0.0
    %108 = vmatprep.subr.mxu0 0.0
    %109 = vmatpush1.msra.mxu0 0.0
    %110 = vmatprep.subr.mxu0 0.0
    %111 = vmatpush1.msra.mxu0 0.0
    %112 = vmatprep.subr.mxu0 0.0
    %113 = vmatpush1.msra.mxu0 0.0
    %114 = vmatprep.subr.mxu0 0.0
    %115 = vmatpush1.msra.mxu0 0.0
    %116 = vmatprep.subr.mxu0 0.0
    %117 = vmatpush1.msra.mxu0 0.0
    %118 = vmatprep.subr.mxu0 0.0
    %119 = vmatpush1.msra.mxu0 0.0
    %120 = vmatprep.subr.mxu0 0.0
    %121 = vmatpush1.msra.mxu0 0.0
    %122 = vmatprep.subr.mxu0 0.0
    %123 = vmatpush1.msra.mxu0 0.0
    %124 = vmatprep.subr.mxu0 0.0
    %125 = vmatpush1.msra.mxu0 0.0
    %126 = vmatprep.subr.mxu0 0.0
    %127 = vmatpush1.msra.mxu0 0.0
    %128 = vmatprep.subr.mxu0 0.0
    %129 = vmatpush1.msra.mxu0 0.0
    %130 = vmatprep.subr.mxu0 0.0
    %131 = vmatpush1.msra.mxu0 0.0
    %132 = vmatprep.subr.mxu0 0.0
    %133 = vmatpush1.msra.mxu0 0.0
    %134 = vmatprep.subr.mxu0 0.0
    %135 = vmatpush1.msra.mxu0 0.0
    %136 = vmatprep.subr.mxu0 0.0
    %137 = vmatpush1.msra.mxu0 0.0
    %138 = vmatprep.mubr.f32.mxu0 0.0
    %139 = vmatmul.mubr.f32.gmra.mrb[0].mxu0 %v65
    %v140 = vpop.f32.mrb[0].mxu0
    %v141 = vadd.f32 %v61, %v140
    %v142 = vpop.f32.mrb[0].mxu0
    %143 = vmatprep.mubr.f32.mxu0 0.0
    %144 = vmatmul.mubr.f32.gmra.mrb[0].mxu0 %v68
    %v145 = vpop.f32.mrb[0].mxu0
    %v146 = vadd.f32 %v61, %v145
    %v147 = vpop.f32.mrb[0].mxu0
    %148 = vdwg.mxu0
    %v149 = vmax.f32 %v141, 0.0
    %v150 = vmax.f32 %v146, 0.0
    %v151 = vld [vmem:[#allocation5] sm:$0xff]
    %v152 = vld [vmem:[#allocation5 + $0x8] sm:$0xff]
    %v153 = vld [vmem:[#allocation5 + $0x10] sm:$0xff]
    %v154 = vld [vmem:[#allocation5 + $0x18] sm:$0xff]
    %v155 = vld [vmem:[%s4] sm:$0x1]
    %v157 = vlaneseq
    %v158 = vshrl.u32 %v157, 7
    %v159 = vsub.s32 0, %v158
    %v160 = vrot.slane %v155, %v159
    %vm162 = vcmask 261120
    %v164 = vsel %vm162, %v149, 0
    %v167 = vsel %vm162, %v150, 0
    %169 = vmatprep.subr.mxu0 0.0
    %170 = vmatpush1.msra.mxu0 %v151
    %171 = vmatprep.subr.mxu0 0.0
    %172 = vmatpush1.msra.mxu0 %v152
    %173 = vmatprep.subr.mxu0 0.0
    %174 = vmatpush1.msra.mxu0 %v153
    %175 = vmatprep.subr.mxu0 0.0
    %176 = vmatpush1.msra.mxu0 %v154
    %177 = vmatprep.subr.mxu0 0.0
    %178 = vmatpush1.msra.mxu0 0.0
    %179 = vmatprep.subr.mxu0 0.0
    %180 = vmatpush1.msra.mxu0 0.0
    %181 = vmatprep.subr.mxu0 0.0
    %182 = vmatpush1.msra.mxu0 0.0
    %183 = vmatprep.subr.mxu0 0.0
    %184 = vmatpush1.msra.mxu0 0.0
    %185 = vmatprep.subr.mxu0 0.0
    %186 = vmatpush1.msra.mxu0 0.0
    %187 = vmatprep.subr.mxu0 0.0
    %188 = vmatpush1.msra.mxu0 0.0
    %189 = vmatprep.subr.mxu0 0.0
    %190 = vmatpush1.msra.mxu0 0.0
    %191 = vmatprep.subr.mxu0 0.0
    %192 = vmatpush1.msra.mxu0 0.0
    %193 = vmatprep.subr.mxu0 0.0
    %194 = vmatpush1.msra.mxu0 0.0
    %195 = vmatprep.subr.mxu0 0.0
    %196 = vmatpush1.msra.mxu0 0.0
    %197 = vmatprep.subr.mxu0 0.0
    %198 = vmatpush1.msra.mxu0 0.0
    %199 = vmatprep.subr.mxu0 0.0
    %200 = vmatpush1.msra.mxu0 0.0
    %201 = vmatprep.subr.mxu0 0.0
    %202 = vmatpush1.msra.mxu0 0.0
    %203 = vmatprep.subr.mxu0 0.0
    %204 = vmatpush1.msra.mxu0 0.0
    %205 = vmatprep.subr.mxu0 0.0
    %206 = vmatpush1.msra.mxu0 0.0
    %207 = vmatprep.subr.mxu0 0.0
    %208 = vmatpush1.msra.mxu0 0.0
    %209 = vmatprep.subr.mxu0 0.0
    %210 = vmatpush1.msra.mxu0 0.0
    %211 = vmatprep.subr.mxu0 0.0
    %212 = vmatpush1.msra.mxu0 0.0
    %213 = vmatprep.subr.mxu0 0.0
    %214 = vmatpush1.msra.mxu0 0.0
    %215 = vmatprep.subr.mxu0 0.0
    %216 = vmatpush1.msra.mxu0 0.0
    %217 = vmatprep.subr.mxu0 0.0
    %218 = vmatpush1.msra.mxu0 0.0
    %219 = vmatprep.subr.mxu0 0.0
    %220 = vmatpush1.msra.mxu0 0.0
    %221 = vmatprep.subr.mxu0 0.0
    %222 = vmatpush1.msra.mxu0 0.0
    %223 = vmatprep.subr.mxu0 0.0
    %224 = vmatpush1.msra.mxu0 0.0
    %225 = vmatprep.subr.mxu0 0.0
    %226 = vmatpush1.msra.mxu0 0.0
    %227 = vmatprep.subr.mxu0 0.0
    %228 = vmatpush1.msra.mxu0 0.0
    %229 = vmatprep.subr.mxu0 0.0
    %230 = vmatpush1.msra.mxu0 0.0
    %231 = vmatprep.subr.mxu0 0.0
    %232 = vmatpush1.msra.mxu0 0.0
    %233 = vmatprep.mubr.f32.mxu0 0.0
    %234 = vmatmul.mubr.f32.gmra.mrb[0].mxu0 %v164
    %v235 = vpop.f32.mrb[0].mxu0
    %v236 = vadd.f32 %v160, %v235
    %v237 = vpop.f32.mrb[0].mxu0
    %238 = vmatprep.mubr.f32.mxu0 0.0
    %239 = vmatmul.mubr.f32.gmra.mrb[0].mxu0 %v167
    %v240 = vpop.f32.mrb[0].mxu0
    %v241 = vadd.f32 %v160, %v240
    %v242 = vpop.f32.mrb[0].mxu0
    %243 = vdwg.mxu0
    %v244 = vmax.f32 %v236, 0.0
    %v245 = vmax.f32 %v241, 0.0
    %s246 = scalar_lea.vmem [#allocation5], 32
    %v247 = vld [vmem:[%s246] sm:$0xff]
    %v248 = vld [vmem:[%s246 + $0x8] sm:$0xff]
    %v249 = vld [vmem:[%s246 + $0x10] sm:$0xff]
    %v250 = vld [vmem:[%s246 + $0x18] sm:$0xff]
    %s251 = scalar_lea.vmem %s4, 1
    %v252 = vld [vmem:[%s251] sm:$0x1]
    %v254 = vlaneseq
    %v255 = vshrl.u32 %v254, 7
    %v256 = vsub.s32 0, %v255
    %v257 = vrot.slane %v252, %v256
    %v260 = vsel %vm162, %v244, 0
    %v263 = vsel %vm162, %v245, 0
    %265 = vmatprep.subr.mxu0 0.0
    %266 = vmatpush1.msra.mxu0 %v247
    %267 = vmatprep.subr.mxu0 0.0
    %268 = vmatpush1.msra.mxu0 %v248
    %269 = vmatprep.subr.mxu0 0.0
    %270 = vmatpush1.msra.mxu0 %v249
    %271 = vmatprep.subr.mxu0 0.0
    %272 = vmatpush1.msra.mxu0 %v250
    %273 = vmatprep.subr.mxu0 0.0
    %274 = vmatpush1.msra.mxu0 0.0
    %275 = vmatprep.subr.mxu0 0.0
    %276 = vmatpush1.msra.mxu0 0.0
    %277 = vmatprep.subr.mxu0 0.0
    %278 = vmatpush1.msra.mxu0 0.0
    %279 = vmatprep.subr.mxu0 0.0
    %280 = vmatpush1.msra.mxu0 0.0
    %281 = vmatprep.subr.mxu0 0.0
    %282 = vmatpush1.msra.mxu0 0.0
    %283 = vmatprep.subr.mxu0 0.0
    %284 = vmatpush1.msra.mxu0 0.0
    %285 = vmatprep.subr.mxu0 0.0
    %286 = vmatpush1.msra.mxu0 0.0
    %287 = vmatprep.subr.mxu0 0.0
    %288 = vmatpush1.msra.mxu0 0.0
    %289 = vmatprep.subr.mxu0 0.0
    %290 = vmatpush1.msra.mxu0 0.0
    %291 = vmatprep.subr.mxu0 0.0
    %292 = vmatpush1.msra.mxu0 0.0
    %293 = vmatprep.subr.mxu0 0.0
    %294 = vmatpush1.msra.mxu0 0.0
    %295 = vmatprep.subr.mxu0 0.0
    %296 = vmatpush1.msra.mxu0 0.0
    %297 = vmatprep.subr.mxu0 0.0
    %298 = vmatpush1.msra.mxu0 0.0
    %299 = vmatprep.subr.mxu0 0.0
    %300 = vmatpush1.msra.mxu0 0.0
    %301 = vmatprep.subr.mxu0 0.0
    %302 = vmatpush1.msra.mxu0 0.0
    %303 = vmatprep.subr.mxu0 0.0
    %304 = vmatpush1.msra.mxu0 0.0
    %305 = vmatprep.subr.mxu0 0.0
    %306 = vmatpush1.msra.mxu0 0.0
    %307 = vmatprep.subr.mxu0 0.0
    %308 = vmatpush1.msra.mxu0 0.0
    %309 = vmatprep.subr.mxu0 0.0
    %310 = vmatpush1.msra.mxu0 0.0
    %311 = vmatprep.subr.mxu0 0.0
    %312 = vmatpush1.msra.mxu0 0.0
    %313 = vmatprep.subr.mxu0 0.0
    %314 = vmatpush1.msra.mxu0 0.0
    %315 = vmatprep.subr.mxu0 0.0
    %316 = vmatpush1.msra.mxu0 0.0
    %317 = vmatprep.subr.mxu0 0.0
    %318 = vmatpush1.msra.mxu0 0.0
    %319 = vmatprep.subr.mxu0 0.0
    %320 = vmatpush1.msra.mxu0 0.0
    %321 = vmatprep.subr.mxu0 0.0
    %322 = vmatpush1.msra.mxu0 0.0
    %323 = vmatprep.subr.mxu0 0.0
    %324 = vmatpush1.msra.mxu0 0.0
    %325 = vmatprep.subr.mxu0 0.0
    %326 = vmatpush1.msra.mxu0 0.0
    %327 = vmatprep.subr.mxu0 0.0
    %328 = vmatpush1.msra.mxu0 0.0
    %329 = vmatprep.mubr.f32.mxu0 0.0
    %330 = vmatmul.mubr.f32.gmra.mrb[0].mxu0 %v260
    %v331 = vpop.f32.mrb[0].mxu0
    %v332 = vadd.f32 %v257, %v331
    %v333 = vpop.f32.mrb[0].mxu0
    %334 = vmatprep.mubr.f32.mxu0 0.0
    %335 = vmatmul.mubr.f32.gmra.mrb[0].mxu0 %v263
    %v336 = vpop.f32.mrb[0].mxu0
    %v337 = vadd.f32 %v257, %v336
    %v338 = vpop.f32.mrb[0].mxu0
    %339 = vdwg.mxu0
    %v340 = vmax.f32 %v332, 0.0
    %v341 = vmax.f32 %v337, 0.0
    %v342 = vld [vmem:[%s5] sm:$0xff]
    %v343 = vld [vmem:[%s5 + $0x8] sm:$0xff]
    %v344 = vld [vmem:[%s5 + $0x10] sm:$0xff]
    %v345 = vld [vmem:[%s5 + $0x18] sm:$0xff]
    %v346 = vld [vmem:[%s6] sm:$0x1]
    %v348 = vlaneseq
    %v349 = vshrl.u32 %v348, 7
    %v350 = vsub.s32 0, %v349
    %v351 = vrot.slane %v346, %v350
    %v354 = vsel %vm162, %v340, 0
    %v357 = vsel %vm162, %v341, 0
    %359 = vmatprep.subr.mxu0 0.0
    %360 = vmatpush1.msra.mxu0 %v342
    %361 = vmatprep.subr.mxu0 0.0
    %362 = vmatpush1.msra.mxu0 %v343
    %363 = vmatprep.subr.mxu0 0.0
    %364 = vmatpush1.msra.mxu0 %v344
    %365 = vmatprep.subr.mxu0 0.0
    %366 = vmatpush1.msra.mxu0 %v345
    %367 = vmatprep.subr.mxu0 0.0
    %368 = vmatpush1.msra.mxu0 0.0
    %369 = vmatprep.subr.mxu0 0.0
    %370 = vmatpush1.msra.mxu0 0.0
    %371 = vmatprep.subr.mxu0 0.0
    %372 = vmatpush1.msra.mxu0 0.0
    %373 = vmatprep.subr.mxu0 0.0
    %374 = vmatpush1.msra.mxu0 0.0
    %375 = vmatprep.subr.mxu0 0.0
    %376 = vmatpush1.msra.mxu0 0.0
    %377 = vmatprep.subr.mxu0 0.0
    %378 = vmatpush1.msra.mxu0 0.0
    %379 = vmatprep.subr.mxu0 0.0
    %380 = vmatpush1.msra.mxu0 0.0
    %381 = vmatprep.subr.mxu0 0.0
    %382 = vmatpush1.msra.mxu0 0.0
    %383 = vmatprep.subr.mxu0 0.0
    %384 = vmatpush1.msra.mxu0 0.0
    %385 = vmatprep.subr.mxu0 0.0
    %386 = vmatpush1.msra.mxu0 0.0
    %387 = vmatprep.subr.mxu0 0.0
    %388 = vmatpush1.msra.mxu0 0.0
    %389 = vmatprep.subr.mxu0 0.0
    %390 = vmatpush1.msra.mxu0 0.0
    %391 = vmatprep.subr.mxu0 0.0
    %392 = vmatpush1.msra.mxu0 0.0
    %393 = vmatprep.subr.mxu0 0.0
    %394 = vmatpush1.msra.mxu0 0.0
    %395 = vmatprep.subr.mxu0 0.0
    %396 = vmatpush1.msra.mxu0 0.0
    %397 = vmatprep.subr.mxu0 0.0
    %398 = vmatpush1.msra.mxu0 0.0
    %399 = vmatprep.subr.mxu0 0.0
    %400 = vmatpush1.msra.mxu0 0.0
    %401 = vmatprep.subr.mxu0 0.0
    %402 = vmatpush1.msra.mxu0 0.0
    %403 = vmatprep.subr.mxu0 0.0
    %404 = vmatpush1.msra.mxu0 0.0
    %405 = vmatprep.subr.mxu0 0.0
    %406 = vmatpush1.msra.mxu0 0.0
    %407 = vmatprep.subr.mxu0 0.0
    %408 = vmatpush1.msra.mxu0 0.0
    %409 = vmatprep.subr.mxu0 0.0
    %410 = vmatpush1.msra.mxu0 0.0
    %411 = vmatprep.subr.mxu0 0.0
    %412 = vmatpush1.msra.mxu0 0.0
    %413 = vmatprep.subr.mxu0 0.0
    %414 = vmatpush1.msra.mxu0 0.0
    %415 = vmatprep.subr.mxu0 0.0
    %416 = vmatpush1.msra.mxu0 0.0
    %417 = vmatprep.subr.mxu0 0.0
    %418 = vmatpush1.msra.mxu0 0.0
    %419 = vmatprep.subr.mxu0 0.0
    %420 = vmatpush1.msra.mxu0 0.0
    %421 = vmatprep.subr.mxu0 0.0
    %422 = vmatpush1.msra.mxu0 0.0
    %423 = vmatprep.mubr.f32.mxu0 0.0
    %424 = vmatmul.mubr.f32.gmra.mrb[0].mxu0 %v354
    %v425 = vpop.f32.mrb[0].mxu0
    %v426 = vadd.f32 %v351, %v425
    %v427 = vpop.f32.mrb[0].mxu0
    %428 = vmatprep.mubr.f32.mxu0 0.0
    %429 = vmatmul.mubr.f32.gmra.mrb[0].mxu0 %v357
    %v430 = vpop.f32.mrb[0].mxu0
    %v431 = vadd.f32 %v351, %v430
    %v432 = vpop.f32.mrb[0].mxu0
    %433 = vdwg.mxu0
    %434 = vst [vmem:[#allocation7] sm:$0xff] %v426
    %435 = vst [vmem:[#allocation7 + $0x8] sm:$0xff] %v431
    // Predicated region
    $region38: #{tpu_custom_call.1} parent=1 // pred_check
      _
    $region39: #{tpu_custom_call.1} parent=1 // pred_check_branch
      %437 = sbr.rel (0) target = $region41
    $region40: #{tpu_custom_call.1} parent=1 // pred_region
      %s439 = ssub.s32 256, 256
      %440 = vsyncadd [#allocation4], %s439
      %s441 = sshll.u32 [#allocation7], 4
      %s442 = int_to_ptr.vmem [resolvable:$true] %s441
      %447 = dma.vmem_to_hbm [thread:$0]  %s442, 256, %s7, [#allocation4], 128, 128, 8
    $region41: #{tpu_custom_call.1} parent=1 // pred_fallthru
      _
    // Predicated region
    $region42: #{tpu_custom_call.1} parent=1 // pred_check
      _
    $region43: #{tpu_custom_call.1} parent=1 // pred_check_branch
      %449 = sbr.rel (0) target = $region45
    $region44: #{tpu_custom_call.1} parent=1 // pred_region
      %450 = dma.done [#allocation4], 256
    $region45: #{tpu_custom_call.1} parent=1 // pred_fallthru
      _
    %451 = vsyncpa [#allocation3], 1
    %452 = vsyncpa [#allocation6], 1
    %453 = vsyncpa [#allocation4], 1

</llo_original>
